<compile_context>
chip_gen: v7x
topology: tpu7x:2x2x1
jax: 0.10.0
libtpu: 0.0.40
codegen_flags: <defaults>
</compile_context>

<pallas_src>
import functools
import math

import numpy as np
import jax
import jax.numpy as jnp
from jax.experimental import pallas as pl
from jax.experimental.pallas import tpu as pltpu


# ----------------------------------------------------------------------------
# normalize2mom constant (deterministic quadrature instead of random samples)
# ----------------------------------------------------------------------------
def normalize2mom_const(act_np):
    # E[f(z)^2] for z ~ N(0,1) via Gauss-Hermite (probabilists') quadrature.
    # e3nn estimates this with random samples; quadrature gives the same
    # constant up to sampling noise (intentional, deterministic).
    xs, ws = np.polynomial.hermite_e.hermegauss(128)
    second_moment = float(np.sum(ws * act_np(xs) ** 2) / np.sqrt(2.0 * np.pi))
    return second_moment ** -0.5


def _round_up(x, m):
    return (x + m - 1) // m * m


def _vmem_weight_budget_bytes():
    # Allow the resident weight stack to use ~half of VMEM; conservative
    # default (v7x per-TC = 64 MiB) if the query is unavailable.
    try:
        cap = int(pltpu.get_tpu_info().vmem_capacity_bytes)
    except Exception:
        cap = 64 << 20
    return cap // 2


def fold_fc_weights(weights, act_const):
    """Fold the static 1/sqrt(K) layer scale and the normalize2mom constant of
    the previous layer's activation into the weights (exact scalar algebra):
        tanh(y) * c @ (W / sqrt(K))  ==  tanh(y) @ (W * c / sqrt(K))
    Done once at parameter creation, never in the hot path."""
    folded = []
    for i, w in enumerate(weights):
        if i == 0:
            folded.append(w)
        else:
            folded.append(w * jnp.float32(act_const / math.sqrt(w.shape[0])))
    return folded


# ----------------------------------------------------------------------------
# Fused Pallas kernel: all FC layers in one body; intermediates stay on-chip.
# ----------------------------------------------------------------------------
def _fc_fused_kernel(*refs, act_flags, compute_dtype):
    x_ref = refs[0]
    w_refs = refs[1:-1]
    o_ref = refs[-1]

    y = x_ref[...]                      # already in compute_dtype (cast in wrapper)
    for w_ref, apply_act in zip(w_refs, act_flags):
        # MXU matmul, f32 accumulation; weights arrive already in compute_dtype.
        y = jnp.dot(y.astype(compute_dtype), w_ref[...],
                    preferred_element_type=jnp.float32)
        if apply_act:
            # Layer scale and normalize2mom constant are folded into the next
            # layer's weights, so the epilogue is a bare tanh (EUP, f32).
            y = jnp.tanh(y)
    o_ref[...] = y.astype(o_ref.dtype)


def fc_forward(x, folded_weights, *, act_flags=None,
               compute_dtype=jnp.bfloat16, out_dtype=None, tile_m=None):
    """Run the whole FC stack (pre-folded weights) in one pallas_call.

    x:              [M, hs[0]]
    folded_weights: list of [hs[i], hs[i+1]] arrays with scales already folded in
    """
    M, K = x.shape
    assert K == folded_weights[0].shape[0]
    n_layers = len(folded_weights)
    if act_flags is None:
        act_flags = (True,) * (n_layers - 1) + (False,)
    act_flags = tuple(bool(f) for f in act_flags)
    compute_dtype = jnp.dtype(compute_dtype)
    out_dtype = jnp.dtype(x.dtype if out_dtype is None else out_dtype)

    # Operands in compute_dtype (one-time XLA casts; FC caches cast weights so
    # bf16 weights are shipped to the kernel in bf16: half the DMA bytes).
    weights = [w if w.dtype == compute_dtype else w.astype(compute_dtype)
               for w in folded_weights]
    xp = x if x.dtype == compute_dtype else x.astype(compute_dtype)

    # --- VMEM residency guard (v7x has only 64 MiB VMEM) -------------------
    w_bytes = sum(int(w.size) * w.dtype.itemsize for w in weights)
    if n_layers > 1 and 2 * w_bytes > _vmem_weight_budget_bytes():
        # Weight stack does not fit resident: fall back to per-layer calls
        # (intermediates round-trip HBM, stored in compute_dtype).
        # TODO(synk): K/N-tile a single oversized layer with emit_pipeline.
        y = x
        for li, (w, flag) in enumerate(zip(folded_weights, act_flags)):
            last = li == n_layers - 1
            y = fc_forward(y, [w], act_flags=(flag,),
                           compute_dtype=compute_dtype,
                           out_dtype=out_dtype if last else compute_dtype,
                           tile_m=tile_m)
        return y

    # --- Lane-dense output: pad final N to a multiple of 128 ---------------
    n_out = weights[-1].shape[1]
    n_pad = _round_up(n_out, 128)
    if n_pad != n_out:
        weights[-1] = jnp.pad(weights[-1], ((0, 0), (0, n_pad - n_out)))
    w_bytes = sum(int(w.size) * w.dtype.itemsize for w in weights)

    # --- Batch (M) tiling ---------------------------------------------------
    if tile_m is None:
        if M < 16:
            tile_m = _round_up(max(M, 1), 8)
        elif M <= 1024:
            # >=2 grid blocks so v7x's two TensorCores each get part of the batch.
            tile_m = _round_up(pl.cdiv(M, 2), 8)
        else:
            # 512-row tiles sit near the HBM roofline sweet spot on v5e/v6e;
            # only the x/out tiles scale with tile_m (weights stay resident).
            tile_m = 512
    tile_m = max(8, min(tile_m, _round_up(M, 8)))
    m_pad = _round_up(M, tile_m)
    xp = xp if m_pad == M else jnp.pad(xp, ((0, m_pad - M), (0, 0)))
    grid = (m_pad // tile_m,)

    # --- VMEM limit / cost estimate -----------------------------------------
    x_tile_bytes = tile_m * K * xp.dtype.itemsize
    out_tile_bytes = tile_m * n_pad * out_dtype.itemsize
    needed = 2 * w_bytes + 2 * (x_tile_bytes + out_tile_bytes)
    vmem_limit = int(min(64 << 20, max(32 << 20, 2 * needed)))

    flops = 0
    transcendentals = 0
    bytes_accessed = int(xp.size) * xp.dtype.itemsize + w_bytes
    for w, flag in zip(weights, act_flags):
        flops += 2 * m_pad * w.shape[0] * w.shape[1]
        if flag:
            transcendentals += m_pad * w.shape[1]
    bytes_accessed += m_pad * n_pad * out_dtype.itemsize

    kernel = functools.partial(_fc_fused_kernel,
                               act_flags=act_flags,
                               compute_dtype=compute_dtype)
    out_specs = pl.BlockSpec((tile_m, n_pad), lambda i: (i, 0))
    out_shape = jax.ShapeDtypeStruct((m_pad, n_pad), out_dtype)

    def _run(weight_pipeline_mode):
        in_specs = [pl.BlockSpec((tile_m, K), lambda i: (i, 0))]
        for w in weights:
            kw = {}
            if weight_pipeline_mode is not None:
                kw["pipeline_mode"] = weight_pipeline_mode
            in_specs.append(pl.BlockSpec(w.shape, lambda i: (0, 0), **kw))
        return pl.pallas_call(
            kernel,
            out_shape=out_shape,
            grid=grid,
            in_specs=in_specs,
            out_specs=out_specs,
            compiler_params=pltpu.CompilerParams(
                dimension_semantics=("parallel",),
                vmem_limit_bytes=vmem_limit,
            ),
            cost_estimate=pl.CostEstimate(
                flops=flops,
                transcendentals=transcendentals,
                bytes_accessed=bytes_accessed,
            ),
        )(xp, *weights)

    try:
        # Weights have a constant index_map: single-buffer them to halve their
        # VMEM footprint (no pipelining needed for resident blocks).
        out = _run(pl.Buffered(1))
    except Exception:
        out = _run(None)

    if m_pad != M or n_pad != n_out:
        out = out[:M, :n_out]
    return out


# ----------------------------------------------------------------------------
# FC module equivalent
# ----------------------------------------------------------------------------
class FC:
    def __init__(self, hs, key, compute_dtype=jnp.bfloat16):
        assert isinstance(hs, tuple)
        self.hs = hs
        self.compute_dtype = jnp.dtype(compute_dtype)
        # act = normalize2mom(tanh)
        self.act_const = normalize2mom_const(np.tanh)
        # Raw parameters, matching torch.nn.Parameter(torch.randn(h1, h2)).
        self.weights = []
        for h1, h2 in zip(hs, hs[1:]):
            key, sub = jax.random.split(key)
            self.weights.append(jax.random.normal(sub, (h1, h2), dtype=jnp.float32))
        # Static layer scale + act constant folded into weights ONCE; cached
        # per compute dtype so bf16 weights are materialized once, not per call.
        self._folded_f32 = fold_fc_weights(self.weights, self.act_const)
        self._folded = {jnp.dtype(jnp.float32): self._folded_f32}

    def folded_weights(self, dtype):
        dt = jnp.dtype(dtype)
        if dt not in self._folded:
            self._folded[dt] = [w.astype(dt) for w in self._folded_f32]
        return self._folded[dt]

    def __call__(self, x, compute_dtype=None):
        cd = jnp.dtype(self.compute_dtype if compute_dtype is None else compute_dtype)
        return fc_forward(x, self.folded_weights(cd),
                          compute_dtype=cd, out_dtype=x.dtype)

    def __repr__(self):
        return f"{self.__class__.__name__}{self.hs}"


# ----------------------------------------------------------------------------
# Pure-JAX reference (mirrors the PyTorch forward exactly, unfolded weights)
# ----------------------------------------------------------------------------
def fc_reference(x, weights, act_const):
    for i, W in enumerate(weights):
        if i == 0:
            x = x @ W
        else:
            x = x @ (W / x.shape[1] ** 0.5)
        if i < len(weights) - 1:
            x = jnp.tanh(x) * act_const
    return x


if __name__ == "__main__":
    key = jax.random.PRNGKey(0)
    k_params, k_x, k_x2 = jax.random.split(key, 3)

    hs = (32, 64, 16)          # FC(hs=(32, 64, 16), act=tanh)
    batch = 8
    model = FC(hs, k_params)   # bf16 MXU compute by default

    x = jax.random.normal(k_x, (batch, hs[0]), dtype=jnp.float32)
    ref = fc_reference(x, model.weights, model.act_const)

    # f32 compute path: tight tolerance against the reference.
    out_f32 = fc_forward(x, model.folded_weights(jnp.float32),
                         compute_dtype=jnp.float32, out_dtype=jnp.float32)
    out_f32 = jax.block_until_ready(out_f32)
    assert out_f32.shape == (batch, hs[-1])
    np.testing.assert_allclose(np.asarray(out_f32), np.asarray(ref),
                               rtol=1e-4, atol=1e-5)

    # Default bf16-operand MXU path (f32 accumulate), looser tolerance.
    out_bf16 = jax.block_until_ready(model(x))
    assert out_bf16.shape == (batch, hs[-1])
    np.testing.assert_allclose(np.asarray(out_bf16), np.asarray(ref),
                               rtol=5e-2, atol=5e-2)

    # Larger, non-8-aligned batch exercises row padding, lane-dense output
    # padding, and the 2-block "parallel" grid (both v7x TensorCores busy).
    x2 = jax.random.normal(k_x2, (40, hs[0]), dtype=jnp.float32)
    ref2 = fc_reference(x2, model.weights, model.act_const)
    out2 = jax.block_until_ready(model(x2))
    assert out2.shape == (40, hs[-1])
    np.testing.assert_allclose(np.asarray(out2), np.asarray(ref2),
                               rtol=5e-2, atol=5e-2)

    print("KERNEL_OK")
</pallas_src>

<mosaic_0001>
module attributes {stable_mosaic.version = 11 : i64} {
  func.func @_fc_fused_kernel(%arg0: i32, %arg1: memref<8x32xf32, #tpu.memory_space<vmem>>, %arg2: memref<32x64xf32, #tpu.memory_space<vmem>>, %arg3: memref<64x128xf32, #tpu.memory_space<vmem>>, %arg4: memref<8x128xf32, #tpu.memory_space<vmem>>) attributes {dimension_semantics = [#tpu.dimension_semantics<parallel>], iteration_bounds = array<i64: 1>, scalar_prefetch = 0 : i64, scratch_operands = 0 : i64, tpu.core_type = #tpu.core_type<tc>, window_params = [{transform_indices = @transform_0, window_bounds = array<i64: 8, 32>}, {pipeline_mode = #tpu.pipeline_mode<synchronous>, transform_indices = @transform_1, window_bounds = array<i64: 32, 64>}, {pipeline_mode = #tpu.pipeline_mode<synchronous>, transform_indices = @transform_2, window_bounds = array<i64: 64, 128>}, {transform_indices = @transform_3, window_bounds = array<i64: 8, 128>}]} {
    %c0 = arith.constant 0 : index
    %c0_0 = arith.constant 0 : index
    %0 = vector.load %arg1[%c0, %c0_0] : memref<8x32xf32, #tpu.memory_space<vmem>>, vector<8x32xf32>
    %c0_1 = arith.constant 0 : index
    %c0_2 = arith.constant 0 : index
    %1 = vector.load %arg2[%c0_1, %c0_2] : memref<32x64xf32, #tpu.memory_space<vmem>>, vector<32x64xf32>
    %cst = arith.constant dense<0.000000e+00> : vector<8x64xf32>
    %2 = tpu.matmul %0, %1, %cst {dimension_numbers = #tpu.dot_dimension_numbers<[1], [0], [0], [1], [0, 0, 1, 1], [], []>} : vector<8x32xf32>, vector<32x64xf32>, vector<8x64xf32> -> vector<8x64xf32>
    %3 = math.tanh %2 : vector<8x64xf32>
    %c0_3 = arith.constant 0 : index
    %c0_4 = arith.constant 0 : index
    %4 = vector.load %arg3[%c0_3, %c0_4] : memref<64x128xf32, #tpu.memory_space<vmem>>, vector<64x128xf32>
    %cst_5 = arith.constant dense<0.000000e+00> : vector<8x128xf32>
    %5 = tpu.matmul %3, %4, %cst_5 {dimension_numbers = #tpu.dot_dimension_numbers<[1], [0], [0], [1], [0, 0, 1, 1], [], []>} : vector<8x64xf32>, vector<64x128xf32>, vector<8x128xf32> -> vector<8x128xf32>
    %c0_6 = arith.constant 0 : index
    %c0_7 = arith.constant 0 : index
    %6 = vector.load %arg4[%c0_6, %c0_7] : memref<8x128xf32, #tpu.memory_space<vmem>>, vector<8x128xf32>
    tpu.vector_store %arg4[%c0_6, %c0_7], %5 {strides = array<i32>} : memref<8x128xf32, #tpu.memory_space<vmem>>, vector<8x128xf32>,
    return
  }
  func.func @transform_0(%arg0: i32) -> (i32, i32) {
    %c0_i32 = arith.constant 0 : i32
    %c0_i32_0 = arith.constant 0 : i32
    return %arg0, %c0_i32 : i32, i32
  }
  func.func @transform_1(%arg0: i32) -> (i32, i32) {
    %c0_i32 = arith.constant 0 : i32
    %c0_i32_0 = arith.constant 0 : i32
    %c0_i32_1 = arith.constant 0 : i32
    return %c0_i32, %c0_i32_0 : i32, i32
  }
  func.func @transform_2(%arg0: i32) -> (i32, i32) {
    %c0_i32 = arith.constant 0 : i32
    %c0_i32_0 = arith.constant 0 : i32
    %c0_i32_1 = arith.constant 0 : i32
    return %c0_i32, %c0_i32_0 : i32, i32
  }
  func.func @transform_3(%arg0: i32) -> (i32, i32) {
    %c0_i32 = arith.constant 0 : i32
    %c0_i32_0 = arith.constant 0 : i32
    return %arg0, %c0_i32 : i32, i32
  }
}

module attributes {stable_mosaic.version = 11 : i64} {
  func.func @_fc_fused_kernel(%arg0: i32, %arg1: memref<8x32xf32, #tpu.memory_space<vmem>>, %arg2: memref<32x64xf32, #tpu.memory_space<vmem>>, %arg3: memref<64x128xf32, #tpu.memory_space<vmem>>, %arg4: memref<8x128xf32, #tpu.memory_space<vmem>>) attributes {dimension_semantics = [#tpu.dimension_semantics<parallel>], iteration_bounds = array<i64: 1>, scalar_prefetch = 0 : i64, scratch_operands = 0 : i64, tpu.core_type = #tpu.core_type<tc>, window_params = [{transform_indices = @transform_0, window_bounds = array<i64: 8, 32>}, {pipeline_mode = #tpu.pipeline_mode<synchronous>, transform_indices = @transform_1, window_bounds = array<i64: 32, 64>}, {pipeline_mode = #tpu.pipeline_mode<synchronous>, transform_indices = @transform_2, window_bounds = array<i64: 64, 128>}, {transform_indices = @transform_3, window_bounds = array<i64: 8, 128>}]} {
    %c0 = arith.constant 0 : index
    %c0_0 = arith.constant 0 : index
    %0 = vector.load %arg1[%c0, %c0_0] : memref<8x32xf32, #tpu.memory_space<vmem>>, vector<8x32xf32>
    %c0_1 = arith.constant 0 : index
    %c0_2 = arith.constant 0 : index
    %1 = vector.load %arg2[%c0_1, %c0_2] : memref<32x64xf32, #tpu.memory_space<vmem>>, vector<32x64xf32>
    %cst = arith.constant dense<0.000000e+00> : vector<8x64xf32>
    %2 = tpu.matmul %0, %1, %cst {dimension_numbers = #tpu.dot_dimension_numbers<[1], [0], [0], [1], [0, 0, 1, 1], [], []>} : vector<8x32xf32>, vector<32x64xf32>, vector<8x64xf32> -> vector<8x64xf32>
    %3 = math.tanh %2 : vector<8x64xf32>
    %c0_3 = arith.constant 0 : index
    %c0_4 = arith.constant 0 : index
    %4 = vector.load %arg3[%c0_3, %c0_4] : memref<64x128xf32, #tpu.memory_space<vmem>>, vector<64x128xf32>
    %cst_5 = arith.constant dense<0.000000e+00> : vector<8x128xf32>
    %5 = tpu.matmul %3, %4, %cst_5 {dimension_numbers = #tpu.dot_dimension_numbers<[1], [0], [0], [1], [0, 0, 1, 1], [], []>} : vector<8x64xf32>, vector<64x128xf32>, vector<8x128xf32> -> vector<8x128xf32>
    %c0_6 = arith.constant 0 : index
    %c0_7 = arith.constant 0 : index
    %6 = vector.load %arg4[%c0_6, %c0_7] : memref<8x128xf32, #tpu.memory_space<vmem>>, vector<8x128xf32>
    tpu.vector_store %arg4[%c0_6, %c0_7], %5 {strides = array<i32>} : memref<8x128xf32, #tpu.memory_space<vmem>>, vector<8x128xf32>,
    return
  }
  func.func @transform_0(%arg0: i32) -> (i32, i32) {
    %c0_i32 = arith.constant 0 : i32
    %c0_i32_0 = arith.constant 0 : i32
    return %arg0, %c0_i32 : i32, i32
  }
  func.func @transform_1(%arg0: i32) -> (i32, i32) {
    %c0_i32 = arith.constant 0 : i32
    %c0_i32_0 = arith.constant 0 : i32
    %c0_i32_1 = arith.constant 0 : i32
    return %c0_i32, %c0_i32_0 : i32, i32
  }
  func.func @transform_2(%arg0: i32) -> (i32, i32) {
    %c0_i32 = arith.constant 0 : i32
    %c0_i32_0 = arith.constant 0 : i32
    %c0_i32_1 = arith.constant 0 : i32
    return %c0_i32, %c0_i32_0 : i32, i32
  }
  func.func @transform_3(%arg0: i32) -> (i32, i32) {
    %c0_i32 = arith.constant 0 : i32
    %c0_i32_0 = arith.constant 0 : i32
    return %arg0, %c0_i32 : i32, i32
  }
}

</mosaic_0001>

<llo_original>
// kernel: tpu_custom_call.1
$region0: #{tpu_custom_call.1}
  #allocation0 [shape = 'u32[]', space=smem, size = 0x4, offset = 0x4, fixed_abs, tag = 'smem constant byte address 0x4 - core index']
  #allocation1 [shape = 'u32[144,128]{1,0:T(1,128)}', space=vmem, size = 0x12000, scoped, tag = 'internal scratch']
  %s0 = inlined_call_operand.hbm [shape: f32[8,32], index: 0, kind: input, shape index: {}]
  %s1 = inlined_call_operand.hbm [shape: f32[32,64], index: 1, kind: input, shape index: {}]
  %s2 = inlined_call_operand.hbm [shape: f32[64,128], index: 2, kind: input, shape index: {}]
  %s3 = inlined_call_operand.hbm [shape: f32[8,128], index: 3, kind: output, shape index: {}]
  %s4 = sld [smem:[#allocation0]]
  $region34: #{tpu_custom_call.1} parent=0
    _
  %s6 = ssub.s32 1, %s4
  %s7 = scalar_select 0, %s6, %s4
  $region1: #{tpu_custom_call.1} parent=0
    #allocation2 [shape = 'u8[4096]{0}', space=vmem, size = 0x1000, scoped, tag = 'input window, operand 0, single buffered']
    #allocation3 [shape = 's32[1]{0}', space=sflag, size = 0x4, scoped, tag = 'scoped memory for tpu_custom_call.1']
    #allocation4 [shape = 's32[1]{0}', space=sflag, size = 0x4, scoped, tag = 'scoped memory for tpu_custom_call.1']
    #allocation5 [shape = 'u8[16384]{0}', space=vmem, size = 0x4000, scoped, tag = 'input window, operand 1, single buffered']
    #allocation6 [shape = 's32[1]{0}', space=sflag, size = 0x4, scoped, tag = 'scoped memory for tpu_custom_call.1']
    #allocation7 [shape = 'u8[32768]{0}', space=vmem, size = 0x8000, scoped, tag = 'input window, operand 2, single buffered']
    #allocation8 [shape = 'u8[4096]{0}', space=vmem, size = 0x1000, scoped, tag = 'output window, operand 0, single buffered']
    %8 = vsyncpa [#allocation3], 0
    %9 = vsyncpa [#allocation6], 0
    %10 = vsyncpa [#allocation4], 0
    // Predicated region
    $region2: #{tpu_custom_call.1} parent=1 // pred_check
      _
    $region3: #{tpu_custom_call.1} parent=1 // pred_check_branch
      %12 = sbr.rel (0) target = $region5
    $region4: #{tpu_custom_call.1} parent=1 // pred_region
      %s14 = ssub.s32 128, 128
      %15 = vsyncadd [#allocation3], %s14
      %s17 = sshll.u32 [#allocation2], 4
      %s18 = int_to_ptr.vmem [resolvable:$true] %s17
      %20 = dma.hbm_to_vmem [thread:$0]  %s0, 128, %s18, [#allocation3]
    $region5: #{tpu_custom_call.1} parent=1 // pred_fallthru
      _
    // Predicated region
    $region6: #{tpu_custom_call.1} parent=1 // pred_check
      _
    $region7: #{tpu_custom_call.1} parent=1 // pred_check_branch
      %22 = sbr.rel (0) target = $region9
    $region8: #{tpu_custom_call.1} parent=1 // pred_region
      %s24 = ssub.s32 512, 512
      %25 = vsyncadd [#allocation6], %s24
      %s26 = sshll.u32 [#allocation5], 4
      %s27 = int_to_ptr.vmem [resolvable:$true] %s26
      %32 = dma.hbm_to_vmem [thread:$0]  %s1, 512, %s27, [#allocation6], 128, 128, 8
    $region9: #{tpu_custom_call.1} parent=1 // pred_fallthru
      _
    // Predicated region
    $region10: #{tpu_custom_call.1} parent=1 // pred_check
      _
    $region11: #{tpu_custom_call.1} parent=1 // pred_check_branch
      %34 = sbr.rel (0) target = $region13
    $region12: #{tpu_custom_call.1} parent=1 // pred_region
      %s36 = ssub.s32 1024, 1024
      %37 = vsyncadd [#allocation6], %s36
      %s38 = sshll.u32 [#allocation7], 4
      %s39 = int_to_ptr.vmem [resolvable:$true] %s38
      %44 = dma.hbm_to_vmem [thread:$0]  %s2, 1024, %s39, [#allocation6], 128, 128, 8
    $region13: #{tpu_custom_call.1} parent=1 // pred_fallthru
      _
    // Predicated region
    $region14: #{tpu_custom_call.1} parent=1 // pred_check
      _
    $region15: #{tpu_custom_call.1} parent=1 // pred_check_branch
      %46 = sbr.rel (0) target = $region17
    $region16: #{tpu_custom_call.1} parent=1 // pred_region
      %47 = dma.done [#allocation3], 128
    $region17: #{tpu_custom_call.1} parent=1 // pred_fallthru
      _
    // Predicated region
    $region18: #{tpu_custom_call.1} parent=1 // pred_check
      _
    $region19: #{tpu_custom_call.1} parent=1 // pred_check_branch
      %49 = sbr.rel (0) target = $region21
    $region20: #{tpu_custom_call.1} parent=1 // pred_region
      %50 = dma.done [#allocation6], 512
    $region21: #{tpu_custom_call.1} parent=1 // pred_fallthru
      _
    // Predicated region
    $region22: #{tpu_custom_call.1} parent=1 // pred_check
      _
    $region23: #{tpu_custom_call.1} parent=1 // pred_check_branch
      %52 = sbr.rel (0) target = $region25
    $region24: #{tpu_custom_call.1} parent=1 // pred_region
      %53 = dma.done [#allocation6], 1024
    $region25: #{tpu_custom_call.1} parent=1 // pred_fallthru
      _
    %v54 = vld [vmem:[#allocation2] sm:$0xff]
    %v55 = vld [vmem:[#allocation5] sm:$0xff]
    %v56 = vld [vmem:[#allocation5 + $0x8] sm:$0xff]
    %v57 = vld [vmem:[#allocation5 + $0x10] sm:$0xff]
    %v58 = vld [vmem:[#allocation5 + $0x18] sm:$0xff]
    %vm59 = vcmask 261120
    %v61 = vsel %vm59, %v54, 0
    %63 = vmatprep.subr.mxu0 0.0
    %64 = vmatpush1.msra.mxu0 %v55
    %65 = vmatprep.subr.mxu0 0.0
    %66 = vmatpush1.msra.mxu0 %v56
    %67 = vmatprep.subr.mxu0 0.0
    %68 = vmatpush1.msra.mxu0 %v57
    %69 = vmatprep.subr.mxu0 0.0
    %70 = vmatpush1.msra.mxu0 %v58
    %71 = vmatprep.subr.mxu0 0.0
    %72 = vmatpush1.msra.mxu0 0.0
    %73 = vmatprep.subr.mxu0 0.0
    %74 = vmatpush1.msra.mxu0 0.0
    %75 = vmatprep.subr.mxu0 0.0
    %76 = vmatpush1.msra.mxu0 0.0
    %77 = vmatprep.subr.mxu0 0.0
    %78 = vmatpush1.msra.mxu0 0.0
    %79 = vmatprep.subr.mxu0 0.0
    %80 = vmatpush1.msra.mxu0 0.0
    %81 = vmatprep.subr.mxu0 0.0
    %82 = vmatpush1.msra.mxu0 0.0
    %83 = vmatprep.subr.mxu0 0.0
    %84 = vmatpush1.msra.mxu0 0.0
    %85 = vmatprep.subr.mxu0 0.0
    %86 = vmatpush1.msra.mxu0 0.0
    %87 = vmatprep.subr.mxu0 0.0
    %88 = vmatpush1.msra.mxu0 0.0
    %89 = vmatprep.subr.mxu0 0.0
    %90 = vmatpush1.msra.mxu0 0.0
    %91 = vmatprep.subr.mxu0 0.0
    %92 = vmatpush1.msra.mxu0 0.0
    %93 = vmatprep.subr.mxu0 0.0
    %94 = vmatpush1.msra.mxu0 0.0
    %95 = vmatprep.subr.mxu0 0.0
    %96 = vmatpush1.msra.mxu0 0.0
    %97 = vmatprep.subr.mxu0 0.0
    %98 = vmatpush1.msra.mxu0 0.0
    %99 = vmatprep.subr.mxu0 0.0
    %100 = vmatpush1.msra.mxu0 0.0
    %101 = vmatprep.subr.mxu0 0.0
    %102 = vmatpush1.msra.mxu0 0.0
    %103 = vmatprep.subr.mxu0 0.0
    %104 = vmatpush1.msra.mxu0 0.0
    %105 = vmatprep.subr.mxu0 0.0
    %106 = vmatpush1.msra.mxu0 0.0
    %107 = vmatprep.subr.mxu0 0.0
    %108 = vmatpush1.msra.mxu0 0.0
    %109 = vmatprep.subr.mxu0 0.0
    %110 = vmatpush1.msra.mxu0 0.0
    %111 = vmatprep.subr.mxu0 0.0
    %112 = vmatpush1.msra.mxu0 0.0
    %113 = vmatprep.subr.mxu0 0.0
    %114 = vmatpush1.msra.mxu0 0.0
    %115 = vmatprep.subr.mxu0 0.0
    %116 = vmatpush1.msra.mxu0 0.0
    %117 = vmatprep.subr.mxu0 0.0
    %118 = vmatpush1.msra.mxu0 0.0
    %119 = vmatprep.subr.mxu0 0.0
    %120 = vmatpush1.msra.mxu0 0.0
    %121 = vmatprep.subr.mxu0 0.0
    %122 = vmatpush1.msra.mxu0 0.0
    %123 = vmatprep.subr.mxu0 0.0
    %124 = vmatpush1.msra.mxu0 0.0
    %125 = vmatprep.subr.mxu0 0.0
    %126 = vmatpush1.msra.mxu0 0.0
    %127 = vmatprep.mubr.f32.mxu0 0.0
    %128 = vmatmul.mubr.f32.gmra.mrb[0].mxu0 %v61
    %v129 = vpop.f32.mrb[0].mxu0
    %v130 = vadd.f32 0.0, %v129
    %v131 = vpop.f32.mrb[0].mxu0
    %132 = vdwg.mxu0
    %v133 = vtanh.pop %v130
    %v134 = vld [vmem:[#allocation7] sm:$0xff]
    %v135 = vld [vmem:[#allocation7 + $0x8] sm:$0xff]
    %v136 = vld [vmem:[#allocation7 + $0x10] sm:$0xff]
    %v137 = vld [vmem:[#allocation7 + $0x18] sm:$0xff]
    %v138 = vld [vmem:[#allocation7 + $0x20] sm:$0xff]
    %v139 = vld [vmem:[#allocation7 + $0x28] sm:$0xff]
    %v140 = vld [vmem:[#allocation7 + $0x30] sm:$0xff]
    %v141 = vld [vmem:[#allocation7 + $0x38] sm:$0xff]
    %vm142 = vcmask 523264
    %v144 = vsel %vm142, %v133, 0
    %146 = vmatprep.subr.mxu0 0.0
    %147 = vmatpush1.msra.mxu0 %v134
    %148 = vmatprep.subr.mxu0 0.0
    %149 = vmatpush1.msra.mxu0 %v135
    %150 = vmatprep.subr.mxu0 0.0
    %151 = vmatpush1.msra.mxu0 %v136
    %152 = vmatprep.subr.mxu0 0.0
    %153 = vmatpush1.msra.mxu0 %v137
    %154 = vmatprep.subr.mxu0 0.0
    %155 = vmatpush1.msra.mxu0 %v138
    %156 = vmatprep.subr.mxu0 0.0
    %157 = vmatpush1.msra.mxu0 %v139
    %158 = vmatprep.subr.mxu0 0.0
    %159 = vmatpush1.msra.mxu0 %v140
    %160 = vmatprep.subr.mxu0 0.0
    %161 = vmatpush1.msra.mxu0 %v141
    %162 = vmatprep.subr.mxu0 0.0
    %163 = vmatpush1.msra.mxu0 0.0
    %164 = vmatprep.subr.mxu0 0.0
    %165 = vmatpush1.msra.mxu0 0.0
    %166 = vmatprep.subr.mxu0 0.0
    %167 = vmatpush1.msra.mxu0 0.0
    %168 = vmatprep.subr.mxu0 0.0
    %169 = vmatpush1.msra.mxu0 0.0
    %170 = vmatprep.subr.mxu0 0.0
    %171 = vmatpush1.msra.mxu0 0.0
    %172 = vmatprep.subr.mxu0 0.0
    %173 = vmatpush1.msra.mxu0 0.0
    %174 = vmatprep.subr.mxu0 0.0
    %175 = vmatpush1.msra.mxu0 0.0
    %176 = vmatprep.subr.mxu0 0.0
    %177 = vmatpush1.msra.mxu0 0.0
    %178 = vmatprep.subr.mxu0 0.0
    %179 = vmatpush1.msra.mxu0 0.0
    %180 = vmatprep.subr.mxu0 0.0
    %181 = vmatpush1.msra.mxu0 0.0
    %182 = vmatprep.subr.mxu0 0.0
    %183 = vmatpush1.msra.mxu0 0.0
    %184 = vmatprep.subr.mxu0 0.0
    %185 = vmatpush1.msra.mxu0 0.0
    %186 = vmatprep.subr.mxu0 0.0
    %187 = vmatpush1.msra.mxu0 0.0
    %188 = vmatprep.subr.mxu0 0.0
    %189 = vmatpush1.msra.mxu0 0.0
    %190 = vmatprep.subr.mxu0 0.0
    %191 = vmatpush1.msra.mxu0 0.0
    %192 = vmatprep.subr.mxu0 0.0
    %193 = vmatpush1.msra.mxu0 0.0
    %194 = vmatprep.subr.mxu0 0.0
    %195 = vmatpush1.msra.mxu0 0.0
    %196 = vmatprep.subr.mxu0 0.0
    %197 = vmatpush1.msra.mxu0 0.0
    %198 = vmatprep.subr.mxu0 0.0
    %199 = vmatpush1.msra.mxu0 0.0
    %200 = vmatprep.subr.mxu0 0.0
    %201 = vmatpush1.msra.mxu0 0.0
    %202 = vmatprep.subr.mxu0 0.0
    %203 = vmatpush1.msra.mxu0 0.0
    %204 = vmatprep.subr.mxu0 0.0
    %205 = vmatpush1.msra.mxu0 0.0
    %206 = vmatprep.subr.mxu0 0.0
    %207 = vmatpush1.msra.mxu0 0.0
    %208 = vmatprep.subr.mxu0 0.0
    %209 = vmatpush1.msra.mxu0 0.0
    %210 = vmatprep.mubr.f32.mxu0 0.0
    %211 = vmatmul.mubr.f32.gmra.mrb[0].mxu0 %v144
    %v212 = vpop.f32.mrb[0].mxu0
    %v213 = vadd.f32 0.0, %v212
    %v214 = vpop.f32.mrb[0].mxu0
    %215 = vdwg.mxu0
    %216 = vst [vmem:[#allocation8] sm:$0xff] %v213
    // Predicated region
    $region26: #{tpu_custom_call.1} parent=1 // pred_check
      _
    $region27: #{tpu_custom_call.1} parent=1 // pred_check_branch
      %218 = sbr.rel (0) target = $region29
    $region28: #{tpu_custom_call.1} parent=1 // pred_region
      %s220 = ssub.s32 128, 128
      %221 = vsyncadd [#allocation4], %s220
      %s223 = sshll.u32 [#allocation8], 4
      %s224 = int_to_ptr.vmem [resolvable:$true] %s223
      %226 = dma.vmem_to_hbm [thread:$0]  %s224, 128, %s3, [#allocation4]
    $region29: #{tpu_custom_call.1} parent=1 // pred_fallthru
      _
    // Predicated region
    $region30: #{tpu_custom_call.1} parent=1 // pred_check
      _
    $region31: #{tpu_custom_call.1} parent=1 // pred_check_branch
      %228 = sbr.rel (0) target = $region33
    $region32: #{tpu_custom_call.1} parent=1 // pred_region
      %229 = dma.done [#allocation4], 128
    $region33: #{tpu_custom_call.1} parent=1 // pred_fallthru
      _
    %230 = vsyncpa [#allocation3], 1
    %231 = vsyncpa [#allocation6], 1
    %232 = vsyncpa [#allocation4], 1

// kernel: tpu_custom_call.1
$region0: #{tpu_custom_call.1}
  #allocation0 [shape = 'u32[]', space=smem, size = 0x4, offset = 0x4, fixed_abs, tag = 'smem constant byte address 0x4 - core index']
  #allocation1 [shape = 'u32[144,128]{1,0:T(1,128)}', space=vmem, size = 0x12000, scoped, tag = 'internal scratch']
  %s0 = inlined_call_operand.hbm [shape: f32[8,32], index: 0, kind: input, shape index: {}]
  %s1 = inlined_call_operand.hbm [shape: f32[32,64], index: 1, kind: input, shape index: {}]
  %s2 = inlined_call_operand.hbm [shape: f32[64,128], index: 2, kind: input, shape index: {}]
  %s3 = inlined_call_operand.hbm [shape: f32[8,128], index: 3, kind: output, shape index: {}]
  %s4 = sld [smem:[#allocation0]]
  $region34: #{tpu_custom_call.1} parent=0
    _
  %s6 = ssub.s32 1, %s4
  %s7 = scalar_select 0, %s6, %s4
  $region1: #{tpu_custom_call.1} parent=0
    #allocation2 [shape = 'u8[4096]{0}', space=vmem, size = 0x1000, scoped, tag = 'input window, operand 0, single buffered']
    #allocation3 [shape = 's32[1]{0}', space=sflag, size = 0x4, scoped, tag = 'scoped memory for tpu_custom_call.1']
    #allocation4 [shape = 's32[1]{0}', space=sflag, size = 0x4, scoped, tag = 'scoped memory for tpu_custom_call.1']
    #allocation5 [shape = 'u8[16384]{0}', space=vmem, size = 0x4000, scoped, tag = 'input window, operand 1, single buffered']
    #allocation6 [shape = 's32[1]{0}', space=sflag, size = 0x4, scoped, tag = 'scoped memory for tpu_custom_call.1']
    #allocation7 [shape = 'u8[32768]{0}', space=vmem, size = 0x8000, scoped, tag = 'input window, operand 2, single buffered']
    #allocation8 [shape = 'u8[4096]{0}', space=vmem, size = 0x1000, scoped, tag = 'output window, operand 0, single buffered']
    %8 = vsyncpa [#allocation3], 0
    %9 = vsyncpa [#allocation6], 0
    %10 = vsyncpa [#allocation4], 0
    // Predicated region
    $region2: #{tpu_custom_call.1} parent=1 // pred_check
      _
    $region3: #{tpu_custom_call.1} parent=1 // pred_check_branch
      %12 = sbr.rel (0) target = $region5
    $region4: #{tpu_custom_call.1} parent=1 // pred_region
      %s14 = ssub.s32 128, 128
      %15 = vsyncadd [#allocation3], %s14
      %s17 = sshll.u32 [#allocation2], 4
      %s18 = int_to_ptr.vmem [resolvable:$true] %s17
      %20 = dma.hbm_to_vmem [thread:$0]  %s0, 128, %s18, [#allocation3]
    $region5: #{tpu_custom_call.1} parent=1 // pred_fallthru
      _
    // Predicated region
    $region6: #{tpu_custom_call.1} parent=1 // pred_check
      _
    $region7: #{tpu_custom_call.1} parent=1 // pred_check_branch
      %22 = sbr.rel (0) target = $region9
    $region8: #{tpu_custom_call.1} parent=1 // pred_region
      %s24 = ssub.s32 512, 512
      %25 = vsyncadd [#allocation6], %s24
      %s26 = sshll.u32 [#allocation5], 4
      %s27 = int_to_ptr.vmem [resolvable:$true] %s26
      %32 = dma.hbm_to_vmem [thread:$0]  %s1, 512, %s27, [#allocation6], 128, 128, 8
    $region9: #{tpu_custom_call.1} parent=1 // pred_fallthru
      _
    // Predicated region
    $region10: #{tpu_custom_call.1} parent=1 // pred_check
      _
    $region11: #{tpu_custom_call.1} parent=1 // pred_check_branch
      %34 = sbr.rel (0) target = $region13
    $region12: #{tpu_custom_call.1} parent=1 // pred_region
      %s36 = ssub.s32 1024, 1024
      %37 = vsyncadd [#allocation6], %s36
      %s38 = sshll.u32 [#allocation7], 4
      %s39 = int_to_ptr.vmem [resolvable:$true] %s38
      %44 = dma.hbm_to_vmem [thread:$0]  %s2, 1024, %s39, [#allocation6], 128, 128, 8
    $region13: #{tpu_custom_call.1} parent=1 // pred_fallthru
      _
    // Predicated region
    $region14: #{tpu_custom_call.1} parent=1 // pred_check
      _
    $region15: #{tpu_custom_call.1} parent=1 // pred_check_branch
      %46 = sbr.rel (0) target = $region17
    $region16: #{tpu_custom_call.1} parent=1 // pred_region
      %47 = dma.done [#allocation3], 128
    $region17: #{tpu_custom_call.1} parent=1 // pred_fallthru
      _
    // Predicated region
    $region18: #{tpu_custom_call.1} parent=1 // pred_check
      _
    $region19: #{tpu_custom_call.1} parent=1 // pred_check_branch
      %49 = sbr.rel (0) target = $region21
    $region20: #{tpu_custom_call.1} parent=1 // pred_region
      %50 = dma.done [#allocation6], 512
    $region21: #{tpu_custom_call.1} parent=1 // pred_fallthru
      _
    // Predicated region
    $region22: #{tpu_custom_call.1} parent=1 // pred_check
      _
    $region23: #{tpu_custom_call.1} parent=1 // pred_check_branch
      %52 = sbr.rel (0) target = $region25
    $region24: #{tpu_custom_call.1} parent=1 // pred_region
      %53 = dma.done [#allocation6], 1024
    $region25: #{tpu_custom_call.1} parent=1 // pred_fallthru
      _
    %v54 = vld [vmem:[#allocation2] sm:$0xff]
    %v55 = vld [vmem:[#allocation5] sm:$0xff]
    %v56 = vld [vmem:[#allocation5 + $0x8] sm:$0xff]
    %v57 = vld [vmem:[#allocation5 + $0x10] sm:$0xff]
    %v58 = vld [vmem:[#allocation5 + $0x18] sm:$0xff]
    %vm59 = vcmask 261120
    %v61 = vsel %vm59, %v54, 0
    %63 = vmatprep.subr.mxu0 0.0
    %64 = vmatpush1.msra.mxu0 %v55
    %65 = vmatprep.subr.mxu0 0.0
    %66 = vmatpush1.msra.mxu0 %v56
    %67 = vmatprep.subr.mxu0 0.0
    %68 = vmatpush1.msra.mxu0 %v57
    %69 = vmatprep.subr.mxu0 0.0
    %70 = vmatpush1.msra.mxu0 %v58
    %71 = vmatprep.subr.mxu0 0.0
    %72 = vmatpush1.msra.mxu0 0.0
    %73 = vmatprep.subr.mxu0 0.0
    %74 = vmatpush1.msra.mxu0 0.0
    %75 = vmatprep.subr.mxu0 0.0
    %76 = vmatpush1.msra.mxu0 0.0
    %77 = vmatprep.subr.mxu0 0.0
    %78 = vmatpush1.msra.mxu0 0.0
    %79 = vmatprep.subr.mxu0 0.0
    %80 = vmatpush1.msra.mxu0 0.0
    %81 = vmatprep.subr.mxu0 0.0
    %82 = vmatpush1.msra.mxu0 0.0
    %83 = vmatprep.subr.mxu0 0.0
    %84 = vmatpush1.msra.mxu0 0.0
    %85 = vmatprep.subr.mxu0 0.0
    %86 = vmatpush1.msra.mxu0 0.0
    %87 = vmatprep.subr.mxu0 0.0
    %88 = vmatpush1.msra.mxu0 0.0
    %89 = vmatprep.subr.mxu0 0.0
    %90 = vmatpush1.msra.mxu0 0.0
    %91 = vmatprep.subr.mxu0 0.0
    %92 = vmatpush1.msra.mxu0 0.0
    %93 = vmatprep.subr.mxu0 0.0
    %94 = vmatpush1.msra.mxu0 0.0
    %95 = vmatprep.subr.mxu0 0.0
    %96 = vmatpush1.msra.mxu0 0.0
    %97 = vmatprep.subr.mxu0 0.0
    %98 = vmatpush1.msra.mxu0 0.0
    %99 = vmatprep.subr.mxu0 0.0
    %100 = vmatpush1.msra.mxu0 0.0
    %101 = vmatprep.subr.mxu0 0.0
    %102 = vmatpush1.msra.mxu0 0.0
    %103 = vmatprep.subr.mxu0 0.0
    %104 = vmatpush1.msra.mxu0 0.0
    %105 = vmatprep.subr.mxu0 0.0
    %106 = vmatpush1.msra.mxu0 0.0
    %107 = vmatprep.subr.mxu0 0.0
    %108 = vmatpush1.msra.mxu0 0.0
    %109 = vmatprep.subr.mxu0 0.0
    %110 = vmatpush1.msra.mxu0 0.0
    %111 = vmatprep.subr.mxu0 0.0
    %112 = vmatpush1.msra.mxu0 0.0
    %113 = vmatprep.subr.mxu0 0.0
    %114 = vmatpush1.msra.mxu0 0.0
    %115 = vmatprep.subr.mxu0 0.0
    %116 = vmatpush1.msra.mxu0 0.0
    %117 = vmatprep.subr.mxu0 0.0
    %118 = vmatpush1.msra.mxu0 0.0
    %119 = vmatprep.subr.mxu0 0.0
    %120 = vmatpush1.msra.mxu0 0.0
    %121 = vmatprep.subr.mxu0 0.0
    %122 = vmatpush1.msra.mxu0 0.0
    %123 = vmatprep.subr.mxu0 0.0
    %124 = vmatpush1.msra.mxu0 0.0
    %125 = vmatprep.subr.mxu0 0.0
    %126 = vmatpush1.msra.mxu0 0.0
    %127 = vmatprep.mubr.f32.mxu0 0.0
    %128 = vmatmul.mubr.f32.gmra.mrb[0].mxu0 %v61
    %v129 = vpop.f32.mrb[0].mxu0
    %v130 = vadd.f32 0.0, %v129
    %v131 = vpop.f32.mrb[0].mxu0
    %132 = vdwg.mxu0
    %v133 = vtanh.pop %v130
    %v134 = vld [vmem:[#allocation7] sm:$0xff]
    %v135 = vld [vmem:[#allocation7 + $0x8] sm:$0xff]
    %v136 = vld [vmem:[#allocation7 + $0x10] sm:$0xff]
    %v137 = vld [vmem:[#allocation7 + $0x18] sm:$0xff]
    %v138 = vld [vmem:[#allocation7 + $0x20] sm:$0xff]
    %v139 = vld [vmem:[#allocation7 + $0x28] sm:$0xff]
    %v140 = vld [vmem:[#allocation7 + $0x30] sm:$0xff]
    %v141 = vld [vmem:[#allocation7 + $0x38] sm:$0xff]
    %vm142 = vcmask 523264
    %v144 = vsel %vm142, %v133, 0
    %146 = vmatprep.subr.mxu0 0.0
    %147 = vmatpush1.msra.mxu0 %v134
    %148 = vmatprep.subr.mxu0 0.0
    %149 = vmatpush1.msra.mxu0 %v135
    %150 = vmatprep.subr.mxu0 0.0
    %151 = vmatpush1.msra.mxu0 %v136
    %152 = vmatprep.subr.mxu0 0.0
    %153 = vmatpush1.msra.mxu0 %v137
    %154 = vmatprep.subr.mxu0 0.0
    %155 = vmatpush1.msra.mxu0 %v138
    %156 = vmatprep.subr.mxu0 0.0
    %157 = vmatpush1.msra.mxu0 %v139
    %158 = vmatprep.subr.mxu0 0.0
    %159 = vmatpush1.msra.mxu0 %v140
    %160 = vmatprep.subr.mxu0 0.0
    %161 = vmatpush1.msra.mxu0 %v141
    %162 = vmatprep.subr.mxu0 0.0
    %163 = vmatpush1.msra.mxu0 0.0
    %164 = vmatprep.subr.mxu0 0.0
    %165 = vmatpush1.msra.mxu0 0.0
    %166 = vmatprep.subr.mxu0 0.0
    %167 = vmatpush1.msra.mxu0 0.0
    %168 = vmatprep.subr.mxu0 0.0
    %169 = vmatpush1.msra.mxu0 0.0
    %170 = vmatprep.subr.mxu0 0.0
    %171 = vmatpush1.msra.mxu0 0.0
    %172 = vmatprep.subr.mxu0 0.0
    %173 = vmatpush1.msra.mxu0 0.0
    %174 = vmatprep.subr.mxu0 0.0
    %175 = vmatpush1.msra.mxu0 0.0
    %176 = vmatprep.subr.mxu0 0.0
    %177 = vmatpush1.msra.mxu0 0.0
    %178 = vmatprep.subr.mxu0 0.0
    %179 = vmatpush1.msra.mxu0 0.0
    %180 = vmatprep.subr.mxu0 0.0
    %181 = vmatpush1.msra.mxu0 0.0
    %182 = vmatprep.subr.mxu0 0.0
    %183 = vmatpush1.msra.mxu0 0.0
    %184 = vmatprep.subr.mxu0 0.0
    %185 = vmatpush1.msra.mxu0 0.0
    %186 = vmatprep.subr.mxu0 0.0
    %187 = vmatpush1.msra.mxu0 0.0
    %188 = vmatprep.subr.mxu0 0.0
    %189 = vmatpush1.msra.mxu0 0.0
    %190 = vmatprep.subr.mxu0 0.0
    %191 = vmatpush1.msra.mxu0 0.0
    %192 = vmatprep.subr.mxu0 0.0
    %193 = vmatpush1.msra.mxu0 0.0
    %194 = vmatprep.subr.mxu0 0.0
    %195 = vmatpush1.msra.mxu0 0.0
    %196 = vmatprep.subr.mxu0 0.0
    %197 = vmatpush1.msra.mxu0 0.0
    %198 = vmatprep.subr.mxu0 0.0
    %199 = vmatpush1.msra.mxu0 0.0
    %200 = vmatprep.subr.mxu0 0.0
    %201 = vmatpush1.msra.mxu0 0.0
    %202 = vmatprep.subr.mxu0 0.0
    %203 = vmatpush1.msra.mxu0 0.0
    %204 = vmatprep.subr.mxu0 0.0
    %205 = vmatpush1.msra.mxu0 0.0
    %206 = vmatprep.subr.mxu0 0.0
    %207 = vmatpush1.msra.mxu0 0.0
    %208 = vmatprep.subr.mxu0 0.0
    %209 = vmatpush1.msra.mxu0 0.0
    %210 = vmatprep.mubr.f32.mxu0 0.0
    %211 = vmatmul.mubr.f32.gmra.mrb[0].mxu0 %v144
    %v212 = vpop.f32.mrb[0].mxu0
    %v213 = vadd.f32 0.0, %v212
    %v214 = vpop.f32.mrb[0].mxu0
    %215 = vdwg.mxu0
    %216 = vst [vmem:[#allocation8] sm:$0xff] %v213
    // Predicated region
    $region26: #{tpu_custom_call.1} parent=1 // pred_check
      _
    $region27: #{tpu_custom_call.1} parent=1 // pred_check_branch
      %218 = sbr.rel (0) target = $region29
    $region28: #{tpu_custom_call.1} parent=1 // pred_region
      %s220 = ssub.s32 128, 128
      %221 = vsyncadd [#allocation4], %s220
      %s223 = sshll.u32 [#allocation8], 4
      %s224 = int_to_ptr.vmem [resolvable:$true] %s223
      %226 = dma.vmem_to_hbm [thread:$0]  %s224, 128, %s3, [#allocation4]
    $region29: #{tpu_custom_call.1} parent=1 // pred_fallthru
      _
    // Predicated region
    $region30: #{tpu_custom_call.1} parent=1 // pred_check
      _
    $region31: #{tpu_custom_call.1} parent=1 // pred_check_branch
      %228 = sbr.rel (0) target = $region33
    $region32: #{tpu_custom_call.1} parent=1 // pred_region
      %229 = dma.done [#allocation4], 128
    $region33: #{tpu_custom_call.1} parent=1 // pred_fallthru
      _
    %230 = vsyncpa [#allocation3], 1
    %231 = vsyncpa [#allocation6], 1
    %232 = vsyncpa [#allocation4], 1

</llo_original>
